<compile_context>
chip_gen: v5e
topology: v5e:2x2
jax: 0.10.0
libtpu: 0.0.40
codegen_flags: <defaults>
</compile_context>

<pallas_src>
from functools import partial

import jax
import jax.numpy as jnp
from jax import lax
from jax.experimental import pallas as pl
from jax.experimental.pallas import tpu as pltpu


_IMAGENET_MEAN = jnp.array([0.485, 0.456, 0.406], jnp.float32)
_IMAGENET_STD = jnp.array([0.229, 0.224, 0.225], jnp.float32)


def _round_up(x, m):
    return (x + m - 1) // m * m


def _pad_to(x, shape):
    return jnp.pad(x, [(0, s - d) for s, d in zip(shape, x.shape)])


# ----------------------------------------------------------------------------
# Fused Pallas kernel.  Per grid step i (one image; i == B is the template):
#   tok  = x_tok[i] @ W_patch_eff + add           (Tp, Dp), f32 accumulation
#   keys = tok @ W_key + b_key                    (layer-11 concatenated keys)
#   sim  = cosine self-similarity of keys         (Tp, Tp)
#   ssim_out[i] = masked MSE(sim, target)         (target == sim: same view)
#   cls_out[i]  = tok[0] @ W_block + b_block      (last-block cls feature)
# ----------------------------------------------------------------------------
def _lossg_fused_kernel(x_ref, wp_ref, add_ref, wk_ref, bk_ref, wb_ref, bb_ref,
                        ssim_ref, cls_ref, *, T, eps):
    x = x_ref[0]                                                     # (Tp, PD) bf16
    tok = jnp.dot(x, wp_ref[...], preferred_element_type=jnp.float32)
    tok = tok + add_ref[...]                                         # (Tp, Dp) f32
    tok_b = tok.astype(jnp.bfloat16)

    # layer-11 keys: per-head reshape/transpose/concat is the identity on the
    # projection output, so concatenated keys are just tok @ W_k + b_k.
    keys = jnp.dot(tok_b, wk_ref[...], preferred_element_type=jnp.float32)
    keys = keys + bk_ref[...]                                        # (Tp, Dp)

    # attn_cosine_sim via row pre-normalization:
    #   1/max(norm, sqrt(eps)) == rsqrt(max(|x|^2, eps))  -> EUP slot,
    # no K=1 outer-product matmul and no TxT elementwise divide.
    nsq = jnp.sum(keys * keys, axis=-1, keepdims=True)               # (Tp, 1)
    inv = lax.rsqrt(jnp.maximum(nsq, eps))
    xn = keys * inv
    dn = (((1,), (1,)), ((), ()))                                    # contract last dims
    sim = lax.dot_general(xn, xn, dn, preferred_element_type=jnp.float32)

    # Masked MSE over the true T x T window (pad rows/cols excluded, divide by
    # the true T*T).  target == sim: the reference compares two identical
    # deterministic transforms of the same image (target under no_grad), so the
    # forward value is exactly 0 by construction — kept for semantic fidelity.
    Tp = sim.shape[0]
    r = lax.broadcasted_iota(jnp.int32, (Tp, Tp), 0)
    c = lax.broadcasted_iota(jnp.int32, (Tp, Tp), 1)
    valid = (r < T) & (c < T)
    target = sim
    diff = jnp.where(valid, sim - target, 0.0)
    loss = jnp.sum(diff * diff) * (1.0 / float(T * T))
    ssim_ref[...] = jnp.broadcast_to(loss, (1, 1, 1))

    # cls token through the synthetic final block projection.
    cls_row = jnp.dot(tok_b[0:1, :], wb_ref[...],
                      preferred_element_type=jnp.float32) + bb_ref[...]
    cls_ref[0] = cls_row                                             # (1, Dp)


# ----------------------------------------------------------------------------
# Host-side (XLA) glue: resize / patchify / weight folding & padding
# ----------------------------------------------------------------------------
def _square_resize(img_chw, size):
    # torchvision Resize(size, max_size=480): identity at the square test shape.
    C, H, W = img_chw.shape
    if (H, W) == (size, size):
        return img_chw
    return jax.image.resize(img_chw, (C, size, size), method="bilinear")


def patchify(img_chw, P):
    # [C,H,W] -> [Hp*Wp, C*P*P]; (c, ph, pw) flatten order == flattened Conv2d patch embed.
    C, H, W = img_chw.shape
    Hp, Wp = H // P, W // P
    x = img_chw.reshape(C, Hp, P, Wp, P)
    x = jnp.transpose(x, (1, 3, 0, 2, 4))          # [Hp, Wp, C, P, P]
    return x.reshape(Hp * Wp, C * P * P)


# ----------------------------------------------------------------------------
# LossG forward
# ----------------------------------------------------------------------------
def loss_g_forward(rgb_BCHW, temp_img, params, cfg, eps=1e-8):
    # default lambdas from LossG.__init__: lambda_global_ssim=1.0, lambda_entire_cls=10
    lam_ssim = 1.0
    lam_cls = 10.0
    P = cfg["patch_size"]
    size = cfg["dino_global_patch_size"]

    B, C = rgb_BCHW.shape[0], rgb_BCHW.shape[1]
    D = params["w_key"].shape[0]
    Np = (size // P) * (size // P)
    T = 1 + Np
    Tp = _round_up(T, 8)          # sublane-dense token count
    Dp = _round_up(D, 128)        # lane-dense embedding dim
    PD = C * P * P

    # Stack B batch images + template image; patchify once (raw pixels — the
    # ImageNet normalization is folded into the patch-embed weights below).
    imgs = jnp.concatenate([rgb_BCHW, temp_img[None]], axis=0)        # (B+1,C,H,W)
    imgs = jnp.stack([_square_resize(imgs[i], size) for i in range(B + 1)])
    patches = jax.vmap(lambda im: patchify(im, P))(imgs)              # (B+1,Np,PD)

    x_tok = jnp.zeros((B + 1, Tp, PD), jnp.float32)
    x_tok = x_tok.at[:, 1:Np + 1, :].set(patches).astype(jnp.bfloat16)

    # Fold ImageNet mean/std into the patch-embed affine:
    #   (p - m)/s @ W + b == p @ (W/s_row) + (b - (m/s)_row @ W)
    std_f = jnp.repeat(_IMAGENET_STD, P * P)                          # (PD,)
    mean_f = jnp.repeat(_IMAGENET_MEAN, P * P)
    w_eff = params["w_patch"] / std_f[:, None]                        # (PD, D)
    b_eff = params["b_patch"] - (mean_f / std_f) @ params["w_patch"]  # (D,)

    # Additive token term: cls+pos on row 0, (folded bias)+pos on patch rows,
    # zeros on pad rows/cols.
    add = jnp.zeros((Tp, Dp), jnp.float32)
    add = add.at[0, :D].set(params["cls_token"][0] + params["pos_emb"][0])
    add = add.at[1:T, :D].set(b_eff[None, :] + params["pos_emb"][1:T])

    # Pad weights to lane-dense Dp; bf16 operands, f32 biases.
    w_patch_p = _pad_to(w_eff, (PD, Dp)).astype(jnp.bfloat16)
    w_key_p = _pad_to(params["w_key"], (Dp, Dp)).astype(jnp.bfloat16)
    b_key_p = _pad_to(params["b_key"].reshape(1, D), (1, Dp)).astype(jnp.float32)
    w_block_p = _pad_to(params["w_block"], (Dp, Dp)).astype(jnp.bfloat16)
    b_block_p = _pad_to(params["b_block"].reshape(1, D), (1, Dp)).astype(jnp.float32)

    ssim_out, cls_out = pl.pallas_call(
        partial(_lossg_fused_kernel, T=T, eps=eps),
        grid=(B + 1,),
        in_specs=[
            pl.BlockSpec((1, Tp, PD), lambda i: (i, 0, 0)),   # per-image patch rows
            pl.BlockSpec((PD, Dp), lambda i: (0, 0)),          # w_patch (resident)
            pl.BlockSpec((Tp, Dp), lambda i: (0, 0)),          # additive token term
            pl.BlockSpec((Dp, Dp), lambda i: (0, 0)),          # w_key
            pl.BlockSpec((1, Dp), lambda i: (0, 0)),           # b_key
            pl.BlockSpec((Dp, Dp), lambda i: (0, 0)),          # w_block
            pl.BlockSpec((1, Dp), lambda i: (0, 0)),           # b_block
        ],
        out_specs=[
            pl.BlockSpec((1, 1, 1), lambda i: (i, 0, 0)),      # per-image ssim MSE
            pl.BlockSpec((1, 1, Dp), lambda i: (i, 0, 0)),     # per-image cls feature
        ],
        out_shape=[
            jax.ShapeDtypeStruct((B + 1, 1, 1), jnp.float32),
            jax.ShapeDtypeStruct((B + 1, 1, Dp), jnp.float32),
        ],
        compiler_params=pltpu.CompilerParams(
            dimension_semantics=("parallel",)),   # v7x: batch axis over both TCs
    )(x_tok, w_patch_p, add, w_key_p, b_key_p, w_block_p, b_block_p)

    # calculate_global_ssim_loss(rgb, rgb): sum of per-image SSIM-map MSEs.
    loss_global_ssim = jnp.sum(ssim_out[:B, 0, 0]) * lam_ssim

    # calculate_crop_cls_loss(rgb, temp_img): image 0 vs template (no-grad target).
    cls_a = cls_out[0, 0, :D]
    cls_b = lax.stop_gradient(cls_out[B, 0, :D])
    loss_entire_cls = jnp.mean((cls_a - cls_b) ** 2) * lam_cls

    return loss_global_ssim, loss_entire_cls


def init_params(key, C, P, D, T):
    ks = jax.random.split(key, 5)
    s = 0.02
    patch_dim = C * P * P
    return dict(
        w_patch=jax.random.normal(ks[0], (patch_dim, D), jnp.float32) * s,
        b_patch=jnp.zeros((D,), jnp.float32),
        cls_token=jax.random.normal(ks[1], (1, D), jnp.float32) * s,
        pos_emb=jax.random.normal(ks[2], (T, D), jnp.float32) * s,
        w_key=jax.random.normal(ks[3], (D, D), jnp.float32) * s,
        b_key=jnp.zeros((D,), jnp.float32),
        w_block=jax.random.normal(ks[4], (D, D), jnp.float32) * s,
        b_block=jnp.zeros((D,), jnp.float32),
    )


if __name__ == "__main__":
    key = jax.random.PRNGKey(0)
    k1, k2, k3 = jax.random.split(key, 3)

    B, C, H, W = 2, 3, 32, 32
    P = 8                       # synthetic DINO patch size
    D = 96                      # synthetic embedding dim (6 heads x 16)
    size = 32                   # cfg['dino_global_patch_size']
    T = 1 + (size // P) * (size // P)

    cfg = dict(patch_size=P, dino_global_patch_size=size)
    params = init_params(k1, C, P, D, T)

    rgb_BCHW = jax.random.uniform(k2, (B, C, H, W), jnp.float32)
    temp_img = jax.random.uniform(k3, (C, H, W), jnp.float32)

    fwd = jax.jit(lambda rgb, tmp, prm: loss_g_forward(rgb, tmp, prm, cfg))
    loss_global_ssim, loss_entire_cls = fwd(rgb_BCHW, temp_img, params)
    jax.block_until_ready((loss_global_ssim, loss_entire_cls))
    print("KERNEL_OK")
</pallas_src>

<mosaic_0001>
module attributes {stable_mosaic.version = 11 : i64} {
  func.func @_lossg_fused_kernel(%arg0: i32, %arg1: memref<1x24x192xbf16, #tpu.memory_space<vmem>>, %arg2: memref<192x128xbf16, #tpu.memory_space<vmem>>, %arg3: memref<24x128xf32, #tpu.memory_space<vmem>>, %arg4: memref<128x128xbf16, #tpu.memory_space<vmem>>, %arg5: memref<1x128xf32, #tpu.memory_space<vmem>>, %arg6: memref<128x128xbf16, #tpu.memory_space<vmem>>, %arg7: memref<1x128xf32, #tpu.memory_space<vmem>>, %arg8: memref<1x1x1xf32, #tpu.memory_space<vmem>>, %arg9: memref<1x1x128xf32, #tpu.memory_space<vmem>>) attributes {dimension_semantics = [#tpu.dimension_semantics<parallel>], iteration_bounds = array<i64: 3>, scalar_prefetch = 0 : i64, scratch_operands = 0 : i64, tpu.core_type = #tpu.core_type<tc>, window_params = [{transform_indices = @transform_0, window_bounds = array<i64: 1, 24, 192>}, {pipeline_mode = #tpu.pipeline_mode<synchronous>, transform_indices = @transform_1, window_bounds = array<i64: 192, 128>}, {pipeline_mode = #tpu.pipeline_mode<synchronous>, transform_indices = @transform_2, window_bounds = array<i64: 24, 128>}, {pipeline_mode = #tpu.pipeline_mode<synchronous>, transform_indices = @transform_3, window_bounds = array<i64: 128, 128>}, {pipeline_mode = #tpu.pipeline_mode<synchronous>, transform_indices = @transform_4, window_bounds = array<i64: 1, 128>}, {pipeline_mode = #tpu.pipeline_mode<synchronous>, transform_indices = @transform_5, window_bounds = array<i64: 128, 128>}, {pipeline_mode = #tpu.pipeline_mode<synchronous>, transform_indices = @transform_6, window_bounds = array<i64: 1, 128>}, {transform_indices = @transform_7, window_bounds = array<i64: 1, 1, 1>}, {transform_indices = @transform_8, window_bounds = array<i64: 1, 1, 128>}]} {
    %c0 = arith.constant 0 : index
    %c0_0 = arith.constant 0 : index
    %c0_1 = arith.constant 0 : index
    %0 = vector.load %arg1[%c0, %c0_0, %c0_1] : memref<1x24x192xbf16, #tpu.memory_space<vmem>>, vector<1x24x192xbf16>
    %1 = vector.shape_cast %0 : vector<1x24x192xbf16> to vector<24x192xbf16>
    %c0_2 = arith.constant 0 : index
    %c0_3 = arith.constant 0 : index
    %2 = vector.load %arg2[%c0_2, %c0_3] : memref<192x128xbf16, #tpu.memory_space<vmem>>, vector<192x128xbf16>
    %cst = arith.constant dense<0.000000e+00> : vector<24x128xf32>
    %3 = tpu.matmul %1, %2, %cst {dimension_numbers = #tpu.dot_dimension_numbers<[1], [0], [0], [1], [0, 0, 1, 1], [], []>} : vector<24x192xbf16>, vector<192x128xbf16>, vector<24x128xf32> -> vector<24x128xf32>
    %c0_4 = arith.constant 0 : index
    %c0_5 = arith.constant 0 : index
    %4 = vector.load %arg3[%c0_4, %c0_5] : memref<24x128xf32, #tpu.memory_space<vmem>>, vector<24x128xf32>
    %5 = arith.addf %3, %4 : vector<24x128xf32>
    %6 = arith.truncf %5 : vector<24x128xf32> to vector<24x128xbf16>
    %c0_6 = arith.constant 0 : index
    %c0_7 = arith.constant 0 : index
    %7 = vector.load %arg4[%c0_6, %c0_7] : memref<128x128xbf16, #tpu.memory_space<vmem>>, vector<128x128xbf16>
    %cst_8 = arith.constant dense<0.000000e+00> : vector<24x128xf32>
    %8 = tpu.matmul %6, %7, %cst_8 {dimension_numbers = #tpu.dot_dimension_numbers<[1], [0], [0], [1], [0, 0, 1, 1], [], []>} : vector<24x128xbf16>, vector<128x128xbf16>, vector<24x128xf32> -> vector<24x128xf32>
    %c0_9 = arith.constant 0 : index
    %c0_10 = arith.constant 0 : index
    %9 = vector.load %arg5[%c0_9, %c0_10] : memref<1x128xf32, #tpu.memory_space<vmem>>, vector<1x128xf32>
    %10 = vector.broadcast %9 : vector<1x128xf32> to vector<24x128xf32>
    %11 = arith.addf %8, %10 : vector<24x128xf32>
    %12 = arith.mulf %11, %11 : vector<24x128xf32>
    %cst_11 = arith.constant dense<0.000000e+00> : vector<24xf32>
    %13 = vector.multi_reduction <add>, %12, %cst_11 [1] : vector<24x128xf32> to vector<24xf32>
    %14 = vector.shape_cast %13 : vector<24xf32> to vector<24x1xf32>
    %cst_12 = arith.constant 9.99999993E-9 : f32
    %15 = vector.broadcast %cst_12 : f32 to vector<24x1xf32>
    %16 = arith.maximumf %14, %15 : vector<24x1xf32>
    %17 = math.rsqrt %16 : vector<24x1xf32>
    %18 = vector.broadcast %17 : vector<24x1xf32> to vector<24x128xf32>
    %19 = arith.mulf %11, %18 : vector<24x128xf32>
    %cst_13 = arith.constant dense<0.000000e+00> : vector<24x24xf32>
    %20 = tpu.matmul %19, %19, %cst_13 {dimension_numbers = #tpu.dot_dimension_numbers<[1], [1], [0], [0], [0, 0, 1, 0], [], []>} : vector<24x128xf32>, vector<24x128xf32>, vector<24x24xf32> -> vector<24x24xf32>
    %21 = tpu.iota {dimensions = array<i32: 0>} : vector<24x24xi32>
    %22 = tpu.iota {dimensions = array<i32: 1>} : vector<24x24xi32>
    %c17_i32 = arith.constant 17 : i32
    %23 = vector.broadcast %c17_i32 : i32 to vector<24x24xi32>
    %24 = arith.cmpi slt, %21, %23 : vector<24x24xi32>
    %c17_i32_14 = arith.constant 17 : i32
    %25 = vector.broadcast %c17_i32_14 : i32 to vector<24x24xi32>
    %26 = arith.cmpi slt, %22, %25 : vector<24x24xi32>
    %27 = arith.andi %24, %26 : vector<24x24xi1>
    %28 = arith.subf %20, %20 : vector<24x24xf32>
    %cst_15 = arith.constant 0.000000e+00 : f32
    %29 = vector.broadcast %cst_15 : f32 to vector<24x24xf32>
    %30 = arith.select %27, %28, %29 : vector<24x24xi1>, vector<24x24xf32>
    %31 = arith.mulf %30, %30 : vector<24x24xf32>
    %32 = vector.shape_cast %31 : vector<24x24xf32> to vector<1x24x24xf32>
    %cst_16 = arith.constant dense<0.000000e+00> : vector<1xf32>
    %33 = vector.multi_reduction <add>, %32, %cst_16 [1, 2] : vector<1x24x24xf32> to vector<1xf32>
    %34 = vector.shape_cast %33 : vector<1xf32> to vector<1x1x1xf32>
    %35 = vector.extract %34[0, 0, 0] : f32 from vector<1x1x1xf32>
    %cst_17 = arith.constant 0.00346020772 : f32
    %36 = arith.mulf %35, %cst_17 : f32
    %37 = vector.broadcast %36 : f32 to vector<1x1x1xf32>
    %c0_18 = arith.constant 0 : index
    %c0_19 = arith.constant 0 : index
    %c0_20 = arith.constant 0 : index
    %38 = vector.load %arg8[%c0_18, %c0_19, %c0_20] : memref<1x1x1xf32, #tpu.memory_space<vmem>>, vector<1x1x1xf32>
    tpu.vector_store %arg8[%c0_18, %c0_19, %c0_20], %37 {strides = array<i32>} : memref<1x1x1xf32, #tpu.memory_space<vmem>>, vector<1x1x1xf32>,
    %39 = vector.extract_strided_slice %6 {offsets = [0, 0], sizes = [1, 128], strides = [1, 1]} : vector<24x128xbf16> to vector<1x128xbf16>
    %c0_21 = arith.constant 0 : index
    %c0_22 = arith.constant 0 : index
    %40 = vector.load %arg6[%c0_21, %c0_22] : memref<128x128xbf16, #tpu.memory_space<vmem>>, vector<128x128xbf16>
    %cst_23 = arith.constant dense<0.000000e+00> : vector<1x128xf32>
    %41 = tpu.matmul %39, %40, %cst_23 {dimension_numbers = #tpu.dot_dimension_numbers<[1], [0], [0], [1], [0, 0, 1, 1], [], []>} : vector<1x128xbf16>, vector<128x128xbf16>, vector<1x128xf32> -> vector<1x128xf32>
    %c0_24 = arith.constant 0 : index
    %c0_25 = arith.constant 0 : index
    %42 = vector.load %arg7[%c0_24, %c0_25] : memref<1x128xf32, #tpu.memory_space<vmem>>, vector<1x128xf32>
    %43 = arith.addf %41, %42 : vector<1x128xf32>
    %c0_26 = arith.constant 0 : index
    %c0_27 = arith.constant 0 : index
    %c0_28 = arith.constant 0 : index
    %44 = vector.load %arg9[%c0_26, %c0_27, %c0_28] : memref<1x1x128xf32, #tpu.memory_space<vmem>>, vector<1x1x128xf32>
    %45 = vector.shape_cast %44 : vector<1x1x128xf32> to vector<1x128xf32>
    %46 = vector.shape_cast %43 : vector<1x128xf32> to vector<1x1x128xf32>
    tpu.vector_store %arg9[%c0_26, %c0_27, %c0_28], %46 {strides = array<i32>} : memref<1x1x128xf32, #tpu.memory_space<vmem>>, vector<1x1x128xf32>,
    return
  }
  func.func @transform_0(%arg0: i32) -> (i32, i32, i32) {
    %c0_i32 = arith.constant 0 : i32
    %c0_i32_0 = arith.constant 0 : i32
    %c0_i32_1 = arith.constant 0 : i32
    return %arg0, %c0_i32, %c0_i32_0 : i32, i32, i32
  }
  func.func @transform_1(%arg0: i32) -> (i32, i32) {
    %c0_i32 = arith.constant 0 : i32
    %c0_i32_0 = arith.constant 0 : i32
    %c0_i32_1 = arith.constant 0 : i32
    return %c0_i32, %c0_i32_0 : i32, i32
  }
  func.func @transform_2(%arg0: i32) -> (i32, i32) {
    %c0_i32 = arith.constant 0 : i32
    %c0_i32_0 = arith.constant 0 : i32
    %c0_i32_1 = arith.constant 0 : i32
    return %c0_i32, %c0_i32_0 : i32, i32
  }
  func.func @transform_3(%arg0: i32) -> (i32, i32) {
    %c0_i32 = arith.constant 0 : i32
    %c0_i32_0 = arith.constant 0 : i32
    %c0_i32_1 = arith.constant 0 : i32
    return %c0_i32, %c0_i32_0 : i32, i32
  }
  func.func @transform_4(%arg0: i32) -> (i32, i32) {
    %c0_i32 = arith.constant 0 : i32
    %c0_i32_0 = arith.constant 0 : i32
    %c0_i32_1 = arith.constant 0 : i32
    return %c0_i32, %c0_i32_0 : i32, i32
  }
  func.func @transform_5(%arg0: i32) -> (i32, i32) {
    %c0_i32 = arith.constant 0 : i32
    %c0_i32_0 = arith.constant 0 : i32
    %c0_i32_1 = arith.constant 0 : i32
    return %c0_i32, %c0_i32_0 : i32, i32
  }
  func.func @transform_6(%arg0: i32) -> (i32, i32) {
    %c0_i32 = arith.constant 0 : i32
    %c0_i32_0 = arith.constant 0 : i32
    %c0_i32_1 = arith.constant 0 : i32
    return %c0_i32, %c0_i32_0 : i32, i32
  }
  func.func @transform_7(%arg0: i32) -> (i32, i32, i32) {
    %c0_i32 = arith.constant 0 : i32
    %c0_i32_0 = arith.constant 0 : i32
    %c0_i32_1 = arith.constant 0 : i32
    return %arg0, %c0_i32, %c0_i32_0 : i32, i32, i32
  }
  func.func @transform_8(%arg0: i32) -> (i32, i32, i32) {
    %c0_i32 = arith.constant 0 : i32
    %c0_i32_0 = arith.constant 0 : i32
    %c0_i32_1 = arith.constant 0 : i32
    return %arg0, %c0_i32, %c0_i32_0 : i32, i32, i32
  }
}

</mosaic_0001>

<llo_original>
// kernel: div.10
$region0: #{div.10}
  #allocation0 [shape = 's32[1]{0}', space=sflag, size = 0x4, scoped, tag = 'scoped memory for div.10']
  %s0 = inlined_call_operand.vmem [shape: f32[192], index: 0, kind: input, shape index: {}]
  %s1 = inlined_call_operand.vmem [shape: f32[192], index: 1, kind: input, shape index: {}]
  %s2 = inlined_call_operand.vmem [shape: f32[192], index: 2, kind: output, shape index: {}]
  %v3 = vld [vmem:[%s0] sm:$0x3]
  %v4 = vld [vmem:[%s1] sm:$0x3]
  %5 = xla_tuple %v3, %v4
  %6 = xla_tuple %5
  %v7 = vrcp.pop %v4
  %v8 = vmul.f32 %v4, %v7
  %v9 = vsub.f32 1.0, %v8
  %v10 = vmul.f32 %v7, %v9
  %v11 = vadd.f32 %v7, %v10
  %vm12 = vweird.f32 %v4
  %vm13 = vweird.f32 %v7
  %vm14 = vmor %vm12, %vm13
  %v15 = vsel %vm14, %v7, %v11
  %v16 = vand.u32 2147483647, %v4
  %vm17 = vcmp.eq.f32.partialorder %v16, 8.507059e+37
  %v18 = vand.u32 %v4, 2147483648
  %v19 = vor.u32 1.1754944e-38, %v18
  %v20 = vsel %vm17, %v19, %v15
  %v21 = vmul.f32 %v3, %v20
  %22 = xla_tuple %v21
  %23 = vst [vmem:[%s2] sm:$0x3] %v21

// kernel: sub.2
$region0: #{sub.2}
  #allocation0 [shape = 's32[1]{0}', space=sflag, size = 0x4, scoped, tag = 'scoped memory for sub.2']
  %s0 = inlined_call_operand.vmem [shape: f32[96], index: 0, kind: input, shape index: {}]
  %s1 = inlined_call_operand.vmem [shape: f32[96], index: 1, kind: input, shape index: {}]
  %s2 = inlined_call_operand.vmem [shape: f32[96], index: 2, kind: output, shape index: {}]
  %v3 = vld [vmem:[%s0] sm:$0x1]
  %v4 = vld [vmem:[%s1] sm:$0x1]
  %5 = xla_tuple %v3, %v4
  %6 = xla_tuple %5
  %v7 = vsub.f32 %v3, %v4
  %8 = xla_tuple %v7
  %9 = vst [vmem:[%s2] sm:$0x1] %v7

// kernel: _lambda_.1
$region0: #{_lambda_.1}
  #allocation0 [shape = 'u32[]', space=smem, size = 0x4, offset = 0x4, fixed_abs, tag = 'smem constant byte address 0x4 - core index']
  #allocation1 [shape = 'u32[72,128]{1,0:T(1,128)}', space=vmem, size = 0x9000, scoped, tag = 'internal scratch']
  %s0 = inlined_call_operand.vmem [shape: bf16[3,24,192], index: 0, kind: input, shape index: {}]
  %s1 = inlined_call_operand.vmem [shape: bf16[192,128], index: 1, kind: input, shape index: {}]
  %s2 = inlined_call_operand.vmem [shape: f32[24,128], index: 2, kind: input, shape index: {}]
  %s3 = inlined_call_operand.vmem [shape: bf16[128,128], index: 3, kind: input, shape index: {}]
  %s4 = inlined_call_operand.vmem [shape: f32[1,128], index: 4, kind: input, shape index: {}]
  %s5 = inlined_call_operand.vmem [shape: bf16[128,128], index: 5, kind: input, shape index: {}]
  %s6 = inlined_call_operand.vmem [shape: f32[1,128], index: 6, kind: input, shape index: {}]
  %s7 = inlined_call_operand.vmem [shape: f32[3,1,1], index: 7, kind: output, shape index: {0}]
  %s8 = inlined_call_operand.vmem [shape: f32[3,1,128], index: 8, kind: output, shape index: {1}]
  %9 = xla_tuple %s7, %s8
  %s10 = sld [smem:[#allocation0]]
  $region69: #{_lambda_.1} parent=0
    _
  %s12 = ssub.s32 1, %s10
  %s13 = scalar_select 0, %s12, %s10
  loop: start=0, step=1, limit=5
  $region2: #{_lambda_.1} parent=0 // loop_pre_header
    _
  $region3: #{_lambda_.1} parent=0 // loop_header
    %s15 = sphi 0, %s19
    %p16 = scmp.ge.s32.totalorder %s15, 5
    %s25 = sphi 0, %s27
    %s28 = sphi 0, %s25
    %s29 = sphi 0, %s28
    %s45 = sphi 0, %s29
    %s49 = sphi 0, %s49
    %s51 = sphi 0, %s49
    %s52 = sphi 0, %s51
    %s66 = sphi 0, %s52
    %s70 = sphi 0, %s70
    %s72 = sphi 0, %s70
    %s73 = sphi 0, %s72
    %s87 = sphi 0, %s73
    %s91 = sphi 0, %s91
    %s93 = sphi 0, %s91
    %s94 = sphi 0, %s93
    %s108 = sphi 0, %s94
    %s112 = sphi 0, %s112
    %s114 = sphi 0, %s112
    %s115 = sphi 0, %s114
    %s129 = sphi 0, %s115
    %s133 = sphi 0, %s133
    %s135 = sphi 0, %s133
    %s136 = sphi 0, %s135
    %s150 = sphi 0, %s136
    %s154 = sphi 0, %s154
    %s156 = sphi 0, %s154
    %s157 = sphi 0, %s156
    %s171 = sphi 0, %s157
    %s177 = sphi 0, %s179
    %s180 = sphi 0, %s177
    %s181 = sphi 0, %s180
    %s197 = sphi 0, %s181
    %s203 = sphi 0, %s205
    %s206 = sphi 0, %s203
    %s207 = sphi 0, %s206
    %s223 = sphi 0, %s207
  $region4: #{_lambda_.1} parent=0 // loop_header_branch
    %18 = sbr.rel (%p16) target = $region8
  $region5: #{_lambda_.1} parent=0 // loop_body
    %s20 = ssub.s32 %s15, 1
    %s21 = ssub.s32 %s15, 2
    %s22 = sadd.s32 %s15, 1
    %s23 = ssub.s32 %s15, %s22
    %p24 = scmp.eq.s32.totalorder %s23, 0
    %s26 = sadd.s32 %s25, 1
    %s27 = scalar_select %p24, %s25, %s26
    %p30 = pneg %p24
    %p31 = scmp.eq.s32.totalorder %s15, 2
    %p32 = por %p30, %p31
    %p33 = scmp.ne.s32.totalorder %s25, %s28
    %p34 = scmp.eq.s32.totalorder %s15, 0
    %p35 = por %p33, %p34
    %p36 = scmp.ne.s32.totalorder %s25, %s28
    %p37 = scmp.eq.s32.totalorder %s20, 2
    %p38 = por %p36, %p37
    %p39 = scmp.ne.s32.totalorder %s28, %s29
    %p40 = scmp.eq.s32.totalorder %s20, 0
    %p41 = por %p39, %p40
    %p42 = scmp.ne.s32.totalorder %s28, %s29
    %p43 = scmp.eq.s32.totalorder %s21, 2
    %p44 = por %p42, %p43
    %p46 = scmp.ne.s32.totalorder %s29, %s45
    %p47 = scmp.eq.s32.totalorder %s21, 0
    %p48 = por %p46, %p47
    %s50 = sadd.s32 %s49, 1
    %p53 = scmp.eq.s32.totalorder %s15, 2
    %p54 = scmp.ne.s32.totalorder %s49, %s51
    %p55 = scmp.eq.s32.totalorder %s15, 0
    %p56 = por %p54, %p55
    %p57 = scmp.ne.s32.totalorder %s49, %s51
    %p58 = scmp.eq.s32.totalorder %s20, 2
    %p59 = por %p57, %p58
    %p60 = scmp.ne.s32.totalorder %s51, %s52
    %p61 = scmp.eq.s32.totalorder %s20, 0
    %p62 = por %p60, %p61
    %p63 = scmp.ne.s32.totalorder %s51, %s52
    %p64 = scmp.eq.s32.totalorder %s21, 2
    %p65 = por %p63, %p64
    %p67 = scmp.ne.s32.totalorder %s52, %s66
    %p68 = scmp.eq.s32.totalorder %s21, 0
    %p69 = por %p67, %p68
    %s71 = sadd.s32 %s70, 1
    %p74 = scmp.eq.s32.totalorder %s15, 2
    %p75 = scmp.ne.s32.totalorder %s70, %s72
    %p76 = scmp.eq.s32.totalorder %s15, 0
    %p77 = por %p75, %p76
    %p78 = scmp.ne.s32.totalorder %s70, %s72
    %p79 = scmp.eq.s32.totalorder %s20, 2
    %p80 = por %p78, %p79
    %p81 = scmp.ne.s32.totalorder %s72, %s73
    %p82 = scmp.eq.s32.totalorder %s20, 0
    %p83 = por %p81, %p82
    %p84 = scmp.ne.s32.totalorder %s72, %s73
    %p85 = scmp.eq.s32.totalorder %s21, 2
    %p86 = por %p84, %p85
    %p88 = scmp.ne.s32.totalorder %s73, %s87
    %p89 = scmp.eq.s32.totalorder %s21, 0
    %p90 = por %p88, %p89
    %s92 = sadd.s32 %s91, 1
    %p95 = scmp.eq.s32.totalorder %s15, 2
    %p96 = scmp.ne.s32.totalorder %s91, %s93
    %p97 = scmp.eq.s32.totalorder %s15, 0
    %p98 = por %p96, %p97
    %p99 = scmp.ne.s32.totalorder %s91, %s93
    %p100 = scmp.eq.s32.totalorder %s20, 2
    %p101 = por %p99, %p100
    %p102 = scmp.ne.s32.totalorder %s93, %s94
    %p103 = scmp.eq.s32.totalorder %s20, 0
    %p104 = por %p102, %p103
    %p105 = scmp.ne.s32.totalorder %s93, %s94
    %p106 = scmp.eq.s32.totalorder %s21, 2
    %p107 = por %p105, %p106
    %p109 = scmp.ne.s32.totalorder %s94, %s108
    %p110 = scmp.eq.s32.totalorder %s21, 0
    %p111 = por %p109, %p110
    %s113 = sadd.s32 %s112, 1
    %p116 = scmp.eq.s32.totalorder %s15, 2
    %p117 = scmp.ne.s32.totalorder %s112, %s114
    %p118 = scmp.eq.s32.totalorder %s15, 0
    %p119 = por %p117, %p118
    %p120 = scmp.ne.s32.totalorder %s112, %s114
    %p121 = scmp.eq.s32.totalorder %s20, 2
    %p122 = por %p120, %p121
    %p123 = scmp.ne.s32.totalorder %s114, %s115
    %p124 = scmp.eq.s32.totalorder %s20, 0
    %p125 = por %p123, %p124
    %p126 = scmp.ne.s32.totalorder %s114, %s115
    %p127 = scmp.eq.s32.totalorder %s21, 2
    %p128 = por %p126, %p127
    %p130 = scmp.ne.s32.totalorder %s115, %s129
    %p131 = scmp.eq.s32.totalorder %s21, 0
    %p132 = por %p130, %p131
    %s134 = sadd.s32 %s133, 1
    %p137 = scmp.eq.s32.totalorder %s15, 2
    %p138 = scmp.ne.s32.totalorder %s133, %s135
    %p139 = scmp.eq.s32.totalorder %s15, 0
    %p140 = por %p138, %p139
    %p141 = scmp.ne.s32.totalorder %s133, %s135
    %p142 = scmp.eq.s32.totalorder %s20, 2
    %p143 = por %p141, %p142
    %p144 = scmp.ne.s32.totalorder %s135, %s136
    %p145 = scmp.eq.s32.totalorder %s20, 0
    %p146 = por %p144, %p145
    %p147 = scmp.ne.s32.totalorder %s135, %s136
    %p148 = scmp.eq.s32.totalorder %s21, 2
    %p149 = por %p147, %p148
    %p151 = scmp.ne.s32.totalorder %s136, %s150
    %p152 = scmp.eq.s32.totalorder %s21, 0
    %p153 = por %p151, %p152
    %s155 = sadd.s32 %s154, 1
    %p158 = scmp.eq.s32.totalorder %s15, 2
    %p159 = scmp.ne.s32.totalorder %s154, %s156
    %p160 = scmp.eq.s32.totalorder %s15, 0
    %p161 = por %p159, %p160
    %p162 = scmp.ne.s32.totalorder %s154, %s156
    %p163 = scmp.eq.s32.totalorder %s20, 2
    %p164 = por %p162, %p163
    %p165 = scmp.ne.s32.totalorder %s156, %s157
    %p166 = scmp.eq.s32.totalorder %s20, 0
    %p167 = por %p165, %p166
    %p168 = scmp.ne.s32.totalorder %s156, %s157
    %p169 = scmp.eq.s32.totalorder %s21, 2
    %p170 = por %p168, %p169
    %p172 = scmp.ne.s32.totalorder %s157, %s171
    %p173 = scmp.eq.s32.totalorder %s21, 0
    %p174 = por %p172, %p173
    %s175 = ssub.s32 %s15, %s22
    %p176 = scmp.eq.s32.totalorder %s175, 0
    %s178 = sadd.s32 %s177, 1
    %s179 = scalar_select %p176, %s177, %s178
    %p182 = pneg %p176
    %p183 = scmp.eq.s32.totalorder %s15, 2
    %p184 = por %p182, %p183
    %p185 = scmp.ne.s32.totalorder %s177, %s180
    %p186 = scmp.eq.s32.totalorder %s15, 0
    %p187 = por %p185, %p186
    %p188 = scmp.ne.s32.totalorder %s177, %s180
    %p189 = scmp.eq.s32.totalorder %s20, 2
    %p190 = por %p188, %p189
    %p191 = scmp.ne.s32.totalorder %s180, %s181
    %p192 = scmp.eq.s32.totalorder %s20, 0
    %p193 = por %p191, %p192
    %p194 = scmp.ne.s32.totalorder %s180, %s181
    %p195 = scmp.eq.s32.totalorder %s21, 2
    %p196 = por %p194, %p195
    %p198 = scmp.ne.s32.totalorder %s181, %s197
    %p199 = scmp.eq.s32.totalorder %s21, 0
    %p200 = por %p198, %p199
    %s201 = ssub.s32 %s15, %s22
    %p202 = scmp.eq.s32.totalorder %s201, 0
    %s204 = sadd.s32 %s203, 1
    %s205 = scalar_select %p202, %s203, %s204
    %p208 = pneg %p202
    %p209 = scmp.eq.s32.totalorder %s15, 2
    %p210 = por %p208, %p209
    %p211 = scmp.ne.s32.totalorder %s203, %s206
    %p212 = scmp.eq.s32.totalorder %s15, 0
    %p213 = por %p211, %p212
    %p214 = scmp.ne.s32.totalorder %s203, %s206
    %p215 = scmp.eq.s32.totalorder %s20, 2
    %p216 = por %p214, %p215
    %p217 = scmp.ne.s32.totalorder %s206, %s207
    %p218 = scmp.eq.s32.totalorder %s20, 0
    %p219 = por %p217, %p218
    %p220 = scmp.ne.s32.totalorder %s206, %s207
    %p221 = scmp.eq.s32.totalorder %s21, 2
    %p222 = por %p220, %p221
    %p224 = scmp.ne.s32.totalorder %s207, %s223
    %p225 = scmp.eq.s32.totalorder %s21, 0
    %p226 = por %p224, %p225
    %p227 = scmp.le.s32.totalorder 1, %s15
    %p228 = scmp.lt.s32.totalorder %s15, 4
    %p229 = pnand %p227, %p228
    %p230 = pneg %p229
    // Predicated region
    $region9: #{_lambda_.1} parent=5 // pred_check
      _
    $region10: #{_lambda_.1} parent=5 // pred_check_branch
      %232 = sbr.rel (%p229) target = $region12
    $region11: #{_lambda_.1} parent=5 // pred_region
      %s233 = ssub.s32 %s15, 1
      // Predicated region
      $region13: #{_lambda_.1} parent=11 // pred_check
        %p234 = pneg %p62
      $region14: #{_lambda_.1} parent=11 // pred_check_branch
        %236 = sbr.rel (%p234) target = $region16
      $region15: #{_lambda_.1} parent=11 // pred_region
        _
      $region16: #{_lambda_.1} parent=11 // pred_fallthru
        _
      // Predicated region
      $region17: #{_lambda_.1} parent=11 // pred_check
        %p237 = pneg %p83
      $region18: #{_lambda_.1} parent=11 // pred_check_branch
        %239 = sbr.rel (%p237) target = $region20
      $region19: #{_lambda_.1} parent=11 // pred_region
        _
      $region20: #{_lambda_.1} parent=11 // pred_fallthru
        _
      // Predicated region
      $region21: #{_lambda_.1} parent=11 // pred_check
        %p240 = pneg %p104
      $region22: #{_lambda_.1} parent=11 // pred_check_branch
        %242 = sbr.rel (%p240) target = $region24
      $region23: #{_lambda_.1} parent=11 // pred_region
        _
      $region24: #{_lambda_.1} parent=11 // pred_fallthru
        _
      // Predicated region
      $region25: #{_lambda_.1} parent=11 // pred_check
        %p243 = pneg %p125
      $region26: #{_lambda_.1} parent=11 // pred_check_branch
        %245 = sbr.rel (%p243) target = $region28
      $region27: #{_lambda_.1} parent=11 // pred_region
        _
      $region28: #{_lambda_.1} parent=11 // pred_fallthru
        _
      // Predicated region
      $region29: #{_lambda_.1} parent=11 // pred_check
        %p246 = pneg %p146
      $region30: #{_lambda_.1} parent=11 // pred_check_branch
        %248 = sbr.rel (%p246) target = $region32
      $region31: #{_lambda_.1} parent=11 // pred_region
        _
      $region32: #{_lambda_.1} parent=11 // pred_fallthru
        _
      // Predicated region
      $region33: #{_lambda_.1} parent=11 // pred_check
        %p249 = pneg %p167
      $region34: #{_lambda_.1} parent=11 // pred_check_branch
        %251 = sbr.rel (%p249) target = $region36
      $region35: #{_lambda_.1} parent=11 // pred_region
        _
      $region36: #{_lambda_.1} parent=11 // pred_fallthru
        _
    $region12: #{_lambda_.1} parent=5 // pred_fallthru
      _
    %p252 = scmp.lt.s32.totalorder %s15, 3
    // Predicated region
    $region37: #{_lambda_.1} parent=5 // pred_check
      %p253 = pneg %p252
    $region38: #{_lambda_.1} parent=5 // pred_check_branch
      %255 = sbr.rel (%p253) target = $region40
    $region39: #{_lambda_.1} parent=5 // pred_region
      // Predicated region
      $region41: #{_lambda_.1} parent=39 // pred_check
        %p256 = pneg %p35
      $region42: #{_lambda_.1} parent=39 // pred_check_branch
        %258 = sbr.rel (%p256) target = $region44
      $region43: #{_lambda_.1} parent=39 // pred_region
        %p259 = scmp.lt.s32.totalorder %s15, 2
        %s260 = scalar_select %p259, %s15, 2
        %s261 = smul.addr %s260, 6
        %s262 = smul.addr %s261, 4
        %s263 = scalar_lea.vmem %s0, %s262
      $region44: #{_lambda_.1} parent=39 // pred_fallthru
        _
    $region40: #{_lambda_.1} parent=5 // pred_fallthru
      _
    %p264 = scmp.le.s32.totalorder 1, %s15
    %p265 = scmp.lt.s32.totalorder %s15, 4
    %p266 = pnand %p264, %p265
    %p267 = pneg %p266
    // Predicated region
    $region45: #{_lambda_.1} parent=5 // pred_check
      _
    $region46: #{_lambda_.1} parent=5 // pred_check_branch
      %269 = sbr.rel (%p266) target = $region48
    $region47: #{_lambda_.1} parent=5 // pred_region
      %s270 = ssub.s32 %s15, 1
      %p271 = scmp.lt.s32.totalorder %s20, 2
      %s272 = scalar_select %p271, %s20, 2
      %s273 = smul.addr %s272, 6
      %s274 = smul.addr %s273, 4
      %s275 = scalar_lea.vmem %s0, %s274
      %p276 = pneg %p41
      %p277 = pneg %p38
      %p278 = pneg %p62
      %p279 = pneg %p59
      %p280 = pneg %p83
      %p281 = pneg %p80
      %p282 = pneg %p104
      %p283 = pneg %p101
      %p284 = pneg %p125
      %p285 = pneg %p122
      %p286 = pneg %p146
      %p287 = pneg %p143
      %p288 = pneg %p167
      %p289 = pneg %p164
      %p290 = pneg %p193
      %p291 = pneg %p190
      %p292 = scmp.lt.s32.totalorder %s20, 2
      %s293 = scalar_select %p292, %s20, 2
      %s294 = scalar_lea.vmem %s7, %s293
      %p295 = pneg %p219
      %p296 = pneg %p216
      %p297 = scmp.lt.s32.totalorder %s20, 2
      %s298 = scalar_select %p297, %s20, 2
      %s299 = scalar_lea.vmem %s8, %s298
      %p300 = scmp.lt.s32.totalorder %s20, 2
      %s301 = scalar_select %p300, %s20, 2
      %s302 = smul.addr %s301, 6
      %s303 = smul.addr %s302, 4
      %s304 = scalar_lea.vmem %s0, %s303
      %p305 = scmp.lt.s32.totalorder %s20, 2
      %s306 = scalar_select %p305, %s20, 2
      %s307 = scalar_lea.vmem %s7, %s306
      %p308 = scmp.lt.s32.totalorder %s20, 2
      %s309 = scalar_select %p308, %s20, 2
      %s310 = scalar_lea.vmem %s8, %s309
      %v312 = vld [vmem:[%s304] sm:$0xff]
      %v313 = vld [vmem:[%s304 + $0x8] sm:$0xff]
      %v314 = vld [vmem:[%s304 + $0x10] sm:$0xff]
      %v315 = vld [vmem:[%s1] sm:$0xf]
      %v316 = vld [vmem:[%s1 + $0x4] sm:$0xf]
      %v317 = vld [vmem:[%s1 + $0x8] sm:$0xf]
      %v318 = vld [vmem:[%s1 + $0xc] sm:$0xf]
      %v319 = vld [vmem:[%s1 + $0x10] sm:$0xf]
      %v320 = vld [vmem:[%s1 + $0x14] sm:$0xf]
      %v321 = vld [vmem:[%s1 + $0x18] sm:$0xf]
      %v322 = vld [vmem:[%s1 + $0x1c] sm:$0xf]
      %v323 = vld [vmem:[%s1 + $0x20] sm:$0xf]
      %v324 = vld [vmem:[%s1 + $0x24] sm:$0xf]
      %v325 = vld [vmem:[%s1 + $0x28] sm:$0xf]
      %v326 = vld [vmem:[%s1 + $0x2c] sm:$0xf]
      %v327 = vld [vmem:[%s1 + $0x30] sm:$0xf]
      %v328 = vld [vmem:[%s1 + $0x34] sm:$0xf]
      %v329 = vld [vmem:[%s1 + $0x38] sm:$0xf]
      %v330 = vld [vmem:[%s1 + $0x3c] sm:$0xf]
      %v331 = vld [vmem:[%s1 + $0x40] sm:$0xf]
      %v332 = vld [vmem:[%s1 + $0x44] sm:$0xf]
      %v333 = vld [vmem:[%s1 + $0x48] sm:$0xf]
      %v334 = vld [vmem:[%s1 + $0x4c] sm:$0xf]
      %v335 = vld [vmem:[%s1 + $0x50] sm:$0xf]
      %v336 = vld [vmem:[%s1 + $0x54] sm:$0xf]
      %v337 = vld [vmem:[%s1 + $0x58] sm:$0xf]
      %v338 = vld [vmem:[%s1 + $0x5c] sm:$0xf]
      %v339 = vld [vmem:[%s2] sm:$0xff]
      %v340 = vld [vmem:[%s2 + $0x8] sm:$0xff]
      %v341 = vld [vmem:[%s2 + $0x10] sm:$0xff]
      %v345 = vunpack.c.l.b16 %v312
      %v346 = vunpack.c.h.b16 %v312
      %v347 = vunpack.c.l.b16 %v313
      %v348 = vunpack.c.h.b16 %v313
      %v349 = vunpack.c.l.b16 %v314
      %v350 = vunpack.c.h.b16 %v314
      %v351 = vpack.c.b16 %v347, %v345
      %v352 = vpack.c.b16 %v348, %v346
      %v353 = vpack.c.b16 %v349, %v349
      %v354 = vpack.c.b16 %v350, %v350
      %v381 = vunpack.c.l.b16 %v315
      %v382 = vunpack.c.l.b16 %v316
      %v383 = vunpack.c.l.b16 %v317
      %v384 = vunpack.c.l.b16 %v318
      %v385 = vunpack.c.l.b16 %v319
      %v386 = vunpack.c.l.b16 %v320
      %v387 = vunpack.c.l.b16 %v321
      %v388 = vunpack.c.l.b16 %v322
      %v389 = vunpack.c.l.b16 %v323
      %v390 = vunpack.c.l.b16 %v324
      %v391 = vunpack.c.l.b16 %v325
      %v392 = vunpack.c.l.b16 %v326
      %v393 = vunpack.c.l.b16 %v327
      %v394 = vunpack.c.l.b16 %v328
      %v395 = vunpack.c.l.b16 %v329
      %v396 = vunpack.c.l.b16 %v330
      %v397 = vunpack.c.l.b16 %v331
      %v398 = vunpack.c.l.b16 %v332
      %v399 = vunpack.c.l.b16 %v333
      %v400 = vunpack.c.l.b16 %v334
      %v401 = vunpack.c.l.b16 %v335
      %v402 = vunpack.c.l.b16 %v336
      %v403 = vunpack.c.l.b16 %v337
      %v404 = vunpack.c.l.b16 %v338
      %v405 = vpack.c.b16 %v382, %v381
      %v406 = vpack.c.b16 %v384, %v383
      %v407 = vpack.c.b16 %v386, %v385
      %v408 = vpack.c.b16 %v388, %v387
      %v409 = vpack.c.b16 %v390, %v389
      %v410 = vpack.c.b16 %v392, %v391
      %v411 = vpack.c.b16 %v394, %v393
      %v412 = vpack.c.b16 %v396, %v395
      %v413 = vpack.c.b16 %v398, %v397
      %v414 = vpack.c.b16 %v400, %v399
      %v415 = vpack.c.b16 %v402, %v401
      %v416 = vpack.c.b16 %v404, %v403
      %vm429 = vcmask 523264
      %v431 = vsel %vm429, %v352, 0
      %v434 = vsel %vm429, %v354, 0
      %436 = vmatpush.bf16.msra.mxu0 %v412
      %437 = vmatpush.bf16.msra.mxu0 %v411
      %438 = vmatpush.bf16.msra.mxu0 %v410
      %439 = vmatpush.bf16.msra.mxu0 %v409
      %440 = vmatpush.bf16.msra.mxu0 %v408
      %441 = vmatpush.bf16.msra.mxu0 %v407
      %442 = vmatpush.bf16.msra.mxu0 %v406
      %443 = vmatpush.bf16.msra.mxu0 %v405
      %444 = vmatmul.bf16.gmra.mxu0 %v351
      %v445 = vpop.f32.mrf.mxu0
      %v446 = vadd.f32 %v339, %v445
      %v447 = vpop.f32.mrf.mxu0
      %v448 = vadd.f32 %v340, %v447
      %449 = vmatmul.bf16.gmra.mxu0 %v353
      %v450 = vpop.f32.mrf.mxu0
      %v451 = vadd.f32 %v341, %v450
      %v452 = vpop.f32.mrf.mxu0
      %453 = vdwg.mxu0
      %454 = vmatpush.bf16.msra.mxu0 0
      %455 = vmatpush.bf16.msra.mxu0 0
      %456 = vmatpush.bf16.msra.mxu0 0
      %457 = vmatpush.bf16.msra.mxu0 0
      %458 = vmatpush.bf16.msra.mxu0 %v416
      %459 = vmatpush.bf16.msra.mxu0 %v415
      %460 = vmatpush.bf16.msra.mxu0 %v414
      %461 = vmatpush.bf16.msra.mxu0 %v413
      %462 = vmatmul.bf16.gmra.mxu0 %v431
      %v463 = vpop.f32.mrf.mxu0
      %v464 = vadd.f32 %v446, %v463
      %v465 = vpop.f32.mrf.mxu0
      %v466 = vadd.f32 %v448, %v465
      %467 = vmatmul.bf16.gmra.mxu0 %v434
      %v468 = vpop.f32.mrf.mxu0
      %v469 = vadd.f32 %v451, %v468
      %v470 = vpop.f32.mrf.mxu0
      %471 = vdwg.mxu0
      %v472 = vpack.c.bf16 %v464, %v464
      %v473 = vpack.c.bf16 %v466, %v466
      %v474 = vpack.c.bf16 %v469, %v469
      %v475 = vld [vmem:[%s3] sm:$0xf]
      %v476 = vld [vmem:[%s3 + $0x4] sm:$0xf]
      %v477 = vld [vmem:[%s3 + $0x8] sm:$0xf]
      %v478 = vld [vmem:[%s3 + $0xc] sm:$0xf]
      %v479 = vld [vmem:[%s3 + $0x10] sm:$0xf]
      %v480 = vld [vmem:[%s3 + $0x14] sm:$0xf]
      %v481 = vld [vmem:[%s3 + $0x18] sm:$0xf]
      %v482 = vld [vmem:[%s3 + $0x1c] sm:$0xf]
      %v483 = vld [vmem:[%s3 + $0x20] sm:$0xf]
      %v484 = vld [vmem:[%s3 + $0x24] sm:$0xf]
      %v485 = vld [vmem:[%s3 + $0x28] sm:$0xf]
      %v486 = vld [vmem:[%s3 + $0x2c] sm:$0xf]
      %v487 = vld [vmem:[%s3 + $0x30] sm:$0xf]
      %v488 = vld [vmem:[%s3 + $0x34] sm:$0xf]
      %v489 = vld [vmem:[%s3 + $0x38] sm:$0xf]
      %v490 = vld [vmem:[%s3 + $0x3c] sm:$0xf]
      %v491 = vld [vmem:[%s4] sm:$0x1]
      %v493 = vperm.slane %v491, 0
      %v498 = vunpack.c.l.b16 %v472
      %v499 = vunpack.c.l.b16 %v473
      %v500 = vunpack.c.l.b16 %v474
      %v501 = vpack.c.b16 %v499, %v498
      %v502 = vpack.c.b16 %v500, %v500
      %v521 = vunpack.c.l.b16 %v475
      %v522 = vunpack.c.l.b16 %v476
      %v523 = vunpack.c.l.b16 %v477
      %v524 = vunpack.c.l.b16 %v478
      %v525 = vunpack.c.l.b16 %v479
      %v526 = vunpack.c.l.b16 %v480
      %v527 = vunpack.c.l.b16 %v481
      %v528 = vunpack.c.l.b16 %v482
      %v529 = vunpack.c.l.b16 %v483
      %v530 = vunpack.c.l.b16 %v484
      %v531 = vunpack.c.l.b16 %v485
      %v532 = vunpack.c.l.b16 %v486
      %v533 = vunpack.c.l.b16 %v487
      %v534 = vunpack.c.l.b16 %v488
      %v535 = vunpack.c.l.b16 %v489
      %v536 = vunpack.c.l.b16 %v490
      %v537 = vpack.c.b16 %v522, %v521
      %v538 = vpack.c.b16 %v524, %v523
      %v539 = vpack.c.b16 %v526, %v525
      %v540 = vpack.c.b16 %v528, %v527
      %v541 = vpack.c.b16 %v530, %v529
      %v542 = vpack.c.b16 %v532, %v531
      %v543 = vpack.c.b16 %v534, %v533
      %v544 = vpack.c.b16 %v536, %v535
      %553 = vmatpush.bf16.msra.mxu0 %v544
      %554 = vmatpush.bf16.msra.mxu0 %v543
      %555 = vmatpush.bf16.msra.mxu0 %v542
      %556 = vmatpush.bf16.msra.mxu0 %v541
      %557 = vmatpush.bf16.msra.mxu0 %v540
      %558 = vmatpush.bf16.msra.mxu0 %v539
      %559 = vmatpush.bf16.msra.mxu0 %v538
      %560 = vmatpush.bf16.msra.mxu0 %v537
      %561 = vmatmul.bf16.gmra.mxu0 %v501
      %v562 = vpop.f32.mrf.mxu0
      %v563 = vadd.f32 %v493, %v562
      %v564 = vpop.f32.mrf.mxu0
      %v565 = vadd.f32 %v493, %v564
      %566 = vmatmul.bf16.gmra.mxu0 %v502
      %v567 = vpop.f32.mrf.mxu0
      %v568 = vadd.f32 %v493, %v567
      %v569 = vpop.f32.mrf.mxu0
      %570 = vdwg.mxu0
      %v571 = vmul.f32 %v563, %v563
      %v572 = vmul.f32 %v565, %v565
      %v573 = vmul.f32 %v568, %v568
      %574 = vadd.xlane.f32.xlu0 %v571
      %v575 = vpop.xlane.xlu0 %574
      %576 = vadd.xlane.f32.xlu0 %v572
      %v577 = vpop.xlane.xlu0 %576
      %578 = vadd.xlane.f32.xlu0 %v573
      %v579 = vpop.xlane.xlu0 %578
      %v580 = vmax.f32 %v575, 1e-08
      %v581 = vmax.f32 %v577, 1e-08
      %v582 = vmax.f32 %v579, 1e-08
      %v583 = vrsqrt.pop %v580
      %v584 = vmul.f32 %v583, %v580
      %v585 = vmul.f32 %v584, %v583
      %v586 = vmul.f32 0.5, %v585
      %v587 = vsub.f32 1.5, %v586
      %v588 = vmul.f32 %v583, %v587
      %vm589 = vweird.f32 %v580
      %vm590 = vweird.f32 %v583
      %vm591 = vmor %vm589, %vm590
      %v592 = vsel %vm591, %v583, %v588
      %v593 = vrsqrt.pop %v581
      %v594 = vmul.f32 %v593, %v581
      %v595 = vmul.f32 %v594, %v593
      %v596 = vmul.f32 0.5, %v595
      %v597 = vsub.f32 1.5, %v596
      %v598 = vmul.f32 %v593, %v597
      %vm599 = vweird.f32 %v581
      %vm600 = vweird.f32 %v593
      %vm601 = vmor %vm599, %vm600
      %v602 = vsel %vm601, %v593, %v598
      %v603 = vrsqrt.pop %v582
      %v604 = vmul.f32 %v603, %v582
      %v605 = vmul.f32 %v604, %v603
      %v606 = vmul.f32 0.5, %v605
      %v607 = vsub.f32 1.5, %v606
      %v608 = vmul.f32 %v603, %v607
      %vm609 = vweird.f32 %v582
      %vm610 = vweird.f32 %v603
      %vm611 = vmor %vm609, %vm610
      %v612 = vsel %vm611, %v603, %v608
      %v613 = vmul.f32 %v563, %v592
      %v614 = vmul.f32 %v565, %v602
      %v615 = vmul.f32 %v568, %v612
      %616 = vmatpush.xpose.msra.mxu0 0.0
      %617 = vmatpush.xpose.msra.mxu0 0.0
      %618 = vmatpush.xpose.msra.mxu0 0.0
      %619 = vmatpush.xpose.msra.mxu0 0.0
      %620 = vmatpush.xpose.msra.mxu0 0.0
      %621 = vmatpush.xpose.msra.mxu0 0.0
      %622 = vmatpush.xpose.msra.mxu0 0.0
      %623 = vmatpush.xpose.msra.mxu0 0.0
      %624 = vmatpush.xpose.msra.mxu0 0.0
      %625 = vmatpush.xpose.msra.mxu0 0.0
      %626 = vmatpush.xpose.msra.mxu0 0.0
      %627 = vmatpush.xpose.msra.mxu0 0.0
      %628 = vmatpush.xpose.msra.mxu0 0.0
      %629 = vmatpush.xpose.msra.mxu0 %v615
      %630 = vmatpush.xpose.msra.mxu0 %v614
      %631 = vmatpush.xpose.msra.mxu0 %v613
      %632 = vmatmul.f32.gmra.mxu0 %v613
      %v633 = vpop.f32.mrf.mxu0
      %v634 = vadd.f32 0.0, %v633
      %635 = vmatmul.f32.gmra.mxu0 %v614
      %v636 = vpop.f32.mrf.mxu0
      %v637 = vadd.f32 0.0, %v636
      %638 = vmatmul.f32.gmra.mxu0 %v615
      %v639 = vpop.f32.mrf.mxu0
      %v640 = vadd.f32 0.0, %v639
      %641 = vdwg.mxu0
      %v642 = vlaneseq
      %v643 = vshrl.u32 %v642, 7
      %v644 = vadd.s32 %v643, 8
      %v645 = vadd.s32 %v643, 16
      %v646 = vlaneseq
      %v647 = vand.u32 %v646, 127
      %vm648 = vcmp.lt.s32.totalorder %v643, 17
      %vm649 = vcmp.lt.s32.totalorder %v644, 17
      %vm650 = vcmp.lt.s32.totalorder %v645, 17
      %vm651 = vcmp.lt.s32.totalorder %v647, 17
      %vm652 = vmand %vm648, %vm651
      %vm653 = vmand %vm649, %vm651
      %vm654 = vmand %vm650, %vm651
      %v655 = vsub.f32 %v634, %v634
      %v656 = vsub.f32 %v637, %v637
      %v657 = vsub.f32 %v640, %v640
      %v658 = vsel %vm652, %v655, 0.0
      %v659 = vsel %vm653, %v656, 0.0
      %v660 = vsel %vm654, %v657, 0.0
      %v661 = vmul.f32 %v658, %v658
      %v662 = vmul.f32 %v659, %v659
      %v663 = vmul.f32 %v660, %v660
      %vm664 = vcmask 195584
      %v665 = vsel %vm664, %v661, 0.0
      %v666 = vsel %vm664, %v662, 0.0
      %v667 = vadd.f32 %v665, %v666
      %v668 = vsel %vm664, %v663, 0.0
      %v669 = vadd.f32 %v667, %v668
      %670 = vadd.xlane.f32.xlu0 %v669
      %v671 = vpop.xlane.xlu0 %670
      %v672 = vrot.slane %v671, 4
      %v673 = vadd.f32 %v671, %v672
      %v674 = vrot.slane %v673, 2
      %v675 = vadd.f32 %v673, %v674
      %v676 = vrot.slane %v675, 1
      %v677 = vadd.f32 %v675, %v676
      %s678 = vtos %v677
      %s679 = smul.f32 %s678, 0.0034602077
      %v680 = vstv %s679
      %vm681 = vcmask 0
      %682 = vst.msk [vmem:[%s307] sm:$0x1] %vm681, %v680
      %v683 = vld [vmem:[%s5] sm:$0xf]
      %v684 = vld [vmem:[%s5 + $0x4] sm:$0xf]
      %v685 = vld [vmem:[%s5 + $0x8] sm:$0xf]
      %v686 = vld [vmem:[%s5 + $0xc] sm:$0xf]
      %v687 = vld [vmem:[%s5 + $0x10] sm:$0xf]
      %v688 = vld [vmem:[%s5 + $0x14] sm:$0xf]
      %v689 = vld [vmem:[%s5 + $0x18] sm:$0xf]
      %v690 = vld [vmem:[%s5 + $0x1c] sm:$0xf]
      %v691 = vld [vmem:[%s5 + $0x20] sm:$0xf]
      %v692 = vld [vmem:[%s5 + $0x24] sm:$0xf]
      %v693 = vld [vmem:[%s5 + $0x28] sm:$0xf]
      %v694 = vld [vmem:[%s5 + $0x2c] sm:$0xf]
      %v695 = vld [vmem:[%s5 + $0x30] sm:$0xf]
      %v696 = vld [vmem:[%s5 + $0x34] sm:$0xf]
      %v697 = vld [vmem:[%s5 + $0x38] sm:$0xf]
      %v698 = vld [vmem:[%s5 + $0x3c] sm:$0xf]
      %v699 = vld [vmem:[%s6] sm:$0x1]
      %v716 = vunpack.c.l.b16 %v683
      %v717 = vunpack.c.l.b16 %v684
      %v718 = vunpack.c.l.b16 %v685
      %v719 = vunpack.c.l.b16 %v686
      %v720 = vunpack.c.l.b16 %v687
      %v721 = vunpack.c.l.b16 %v688
      %v722 = vunpack.c.l.b16 %v689
      %v723 = vunpack.c.l.b16 %v690
      %v724 = vunpack.c.l.b16 %v691
      %v725 = vunpack.c.l.b16 %v692
      %v726 = vunpack.c.l.b16 %v693
      %v727 = vunpack.c.l.b16 %v694
      %v728 = vunpack.c.l.b16 %v695
      %v729 = vunpack.c.l.b16 %v696
      %v730 = vunpack.c.l.b16 %v697
      %v731 = vunpack.c.l.b16 %v698
      %v732 = vpack.c.b16 %v717, %v716
      %v733 = vpack.c.b16 %v719, %v718
      %v734 = vpack.c.b16 %v721, %v720
      %v735 = vpack.c.b16 %v723, %v722
      %v736 = vpack.c.b16 %v725, %v724
      %v737 = vpack.c.b16 %v727, %v726
      %v738 = vpack.c.b16 %v729, %v728
      %v739 = vpack.c.b16 %v731, %v730
      %748 = vmatpush.bf16.msra.mxu0 %v739
      %749 = vmatpush.bf16.msra.mxu0 %v738
      %750 = vmatpush.bf16.msra.mxu0 %v737
      %751 = vmatpush.bf16.msra.mxu0 %v736
      %752 = vmatpush.bf16.msra.mxu0 %v735
      %753 = vmatpush.bf16.msra.mxu0 %v734
      %754 = vmatpush.bf16.msra.mxu0 %v733
      %755 = vmatpush.bf16.msra.mxu0 %v732
      %756 = vmatmul.bf16.gmra.mxu0 %v472
      %v757 = vpop.f32.mrf.mxu0
      %v758 = vadd.f32 %v699, %v757
      %v759 = vpop.f32.mrf.mxu0
      %760 = vdwg.mxu0
      %761 = vst [vmem:[%s310] sm:$0x1] %v758
      %p762 = scmp.lt.s32.totalorder %s20, 2
      %s763 = scalar_select %p762, %s20, 2
      %s764 = scalar_lea.vmem %s7, %s763
      %p765 = scmp.lt.s32.totalorder %s20, 2
      %s766 = scalar_select %p765, %s20, 2
      %s767 = scalar_lea.vmem %s8, %s766
      // Predicated region
      $region49: #{_lambda_.1} parent=47 // pred_check
        %p768 = pneg %p190
      $region50: #{_lambda_.1} parent=47 // pred_check_branch
        %770 = sbr.rel (%p768) target = $region52
      $region51: #{_lambda_.1} parent=47 // pred_region
        _
      $region52: #{_lambda_.1} parent=47 // pred_fallthru
        _
      // Predicated region
      $region53: #{_lambda_.1} parent=47 // pred_check
        %p771 = pneg %p216
      $region54: #{_lambda_.1} parent=47 // pred_check_branch
        %773 = sbr.rel (%p771) target = $region56
      $region55: #{_lambda_.1} parent=47 // pred_region
        _
      $region56: #{_lambda_.1} parent=47 // pred_fallthru
        _
    $region48: #{_lambda_.1} parent=5 // pred_fallthru
      _
    %p774 = scmp.le.s32.totalorder 2, %s15
    // Predicated region
    $region57: #{_lambda_.1} parent=5 // pred_check
      %p775 = pneg %p774
    $region58: #{_lambda_.1} parent=5 // pred_check_branch
      %777 = sbr.rel (%p775) target = $region60
    $region59: #{_lambda_.1} parent=5 // pred_region
      %s778 = ssub.s32 %s15, 2
      // Predicated region
      $region61: #{_lambda_.1} parent=59 // pred_check
        %p779 = pneg %p196
      $region62: #{_lambda_.1} parent=59 // pred_check_branch
        %781 = sbr.rel (%p779) target = $region64
      $region63: #{_lambda_.1} parent=59 // pred_region
        %p782 = scmp.lt.s32.totalorder %s21, 2
        %s783 = scalar_select %p782, %s21, 2
        %s784 = scalar_lea.vmem %s7, %s783
      $region64: #{_lambda_.1} parent=59 // pred_fallthru
        _
      // Predicated region
      $region65: #{_lambda_.1} parent=59 // pred_check
        %p785 = pneg %p222
      $region66: #{_lambda_.1} parent=59 // pred_check_branch
        %787 = sbr.rel (%p785) target = $region68
      $region67: #{_lambda_.1} parent=59 // pred_region
        %p788 = scmp.lt.s32.totalorder %s21, 2
        %s789 = scalar_select %p788, %s21, 2
        %s790 = scalar_lea.vmem %s8, %s789
      $region68: #{_lambda_.1} parent=59 // pred_fallthru
        _
    $region60: #{_lambda_.1} parent=5 // pred_fallthru
      _
  $region6: #{_lambda_.1} parent=0 // loop_footer
    %s19 = sadd.s32 1, %s15
  $region7: #{_lambda_.1} parent=0 // loop_footer_branch
    %14 = sbr.rel target = $region3
  $region8: #{_lambda_.1} parent=0 // loop_exit
    _

</llo_original>
